<compile_context>
chip_gen: v7x
topology: tpu7x:2x2x1
jax: 0.10.0
libtpu: 0.0.40
codegen_flags: <defaults>
</compile_context>

<pallas_src>
import functools

import jax
import jax.numpy as jnp
from jax import lax
from jax.experimental import pallas as pl
from jax.experimental.pallas import tpu as pltpu


def _round_up(x: int, m: int) -> int:
    return ((x + m - 1) // m) * m


def _gelu_exact_f32(x):
    # PyTorch nn.GELU default = exact erf-based GELU (computed in f32).
    return 0.5 * x * (1.0 + lax.erf(x * 0.7071067811865476))


def _physical_vmem_bytes() -> int:
    """Best-effort physical VMEM per TensorCore (bytes)."""
    try:
        info = pltpu.get_tpu_info()
        v = getattr(info, "vmem_capacity_bytes", None)
        if v:
            return int(v)
    except Exception:
        pass
    try:
        kind = jax.devices()[0].device_kind.lower()
    except Exception:
        kind = ""
    if "v7" in kind:
        return 64 * 1024 * 1024
    if "v5" in kind or "v6" in kind:
        return 128 * 1024 * 1024
    return 64 * 1024 * 1024  # conservative default


def mlp_block_kernel(x_ref, w1_ref, b1_ref, w2_ref, b2_ref, o_ref):
    # x_ref:  (TM, E)   w1_ref: (E, H)   b1_ref: (1, H)  [f32]
    # w2_ref: (H, E)    b2_ref: (1, E)   [f32]           o_ref: (TM, E)
    x = x_ref[...]

    # lin1 on the MXU, f32 accumulation.
    h = jnp.dot(x, w1_ref[...], preferred_element_type=jnp.float32)
    h = h + b1_ref[...]

    # Exact erf-GELU in f32 on the accumulator (matches nn.GELU default).
    h = _gelu_exact_f32(h)

    # Downcast once to the matmul dtype, then lin2 on the MXU.
    h = h.astype(w2_ref.dtype)
    y = jnp.dot(h, w2_ref[...], preferred_element_type=jnp.float32)
    y = y + b2_ref[...]

    o_ref[...] = y.astype(o_ref.dtype)


@functools.partial(jax.jit, static_argnames=("block_m", "compute_dtype"))
def mlp_block(x, w1, b1, w2, b2, *, block_m=None, compute_dtype=jnp.bfloat16):
    """x: (B, S, E).  w1: (E, H), b1: (H,), w2: (H, E), b2: (E,)."""
    B, S, E = x.shape
    H = w1.shape[1]
    M = B * S

    phys_vmem = _physical_vmem_bytes()
    big_vmem = phys_vmem >= 96 * 1024 * 1024  # v5e/v6e (128 MiB) vs v7x (64 MiB)

    # Sublane multiple of the compute dtype (f32: 8, bf16: 16).
    c_itemsize = jnp.dtype(compute_dtype).itemsize
    sublane = max(8, 32 // c_itemsize)

    # Token-tile size: big, MXU-friendly tiles for large inputs; shrink to the
    # (sublane-rounded) token count for small inputs.
    if block_m is None:
        block_m = 512 if big_vmem else 256
    TM = min(block_m, _round_up(M, sublane))
    TM = _round_up(TM, sublane)
    M_pad = _round_up(M, TM)

    # Pad feature axes to lane-dense multiples of 128 (no-op for real SAM
    # dims 768/1024/1280).  Zero padding is exact: padded input features and
    # padded hidden units contribute 0 (GELU(0)=0), padded output features
    # are sliced off below.
    E_pad = _round_up(E, 128)
    H_pad = _round_up(H, 128)

    x2d = x.reshape(M, E)
    if M_pad != M:
        x2d = jnp.pad(x2d, ((0, M_pad - M), (0, 0)))
    if E_pad != E:
        x2d = jnp.pad(x2d, ((0, 0), (0, E_pad - E)))
        w1 = jnp.pad(w1, ((0, E_pad - E), (0, 0)))
        w2 = jnp.pad(w2, ((0, 0), (0, E_pad - E)))
        b2 = jnp.pad(b2, ((0, E_pad - E),))
    if H_pad != H:
        w1 = jnp.pad(w1, ((0, 0), (0, H_pad - H)))
        b1 = jnp.pad(b1, ((0, H_pad - H),))
        w2 = jnp.pad(w2, ((0, H_pad - H), (0, 0)))

    # bf16 (or user-chosen) matmul operands; f32 biases / accumulation.
    x2d = x2d.astype(compute_dtype)
    w1c = w1.astype(compute_dtype)
    w2c = w2.astype(compute_dtype)
    b1_2d = b1.reshape(1, H_pad).astype(jnp.float32)
    b2_2d = b2.reshape(1, E_pad).astype(jnp.float32)

    num_tiles = M_pad // TM
    out_itemsize = jnp.dtype(x.dtype).itemsize

    # Exact VMEM need: single-buffered weights/biases, double-buffered x/out
    # tiles, (TM, H) f32 intermediate (+ its compute-dtype copy for lin2).
    need = (
        2 * E_pad * H_pad * c_itemsize          # w1 + w2 (Buffered(1))
        + (H_pad + E_pad) * 4                   # b1 + b2 (f32, Buffered(1))
        + 2 * TM * E_pad * c_itemsize           # x tile, double-buffered
        + 2 * TM * E_pad * out_itemsize         # out tile, double-buffered
        + TM * H_pad * 4                        # f32 intermediate
        + TM * H_pad * c_itemsize               # downcast intermediate
    )
    # Leave headroom below physical VMEM for Mosaic internal scratch:
    # ~108 MiB cap on 128-MiB chips, ~56 MiB cap on 64-MiB chips.
    cap = phys_vmem - (20 * 1024 * 1024 if big_vmem else 8 * 1024 * 1024)
    vmem_limit = int(min(cap, max(16 * 1024 * 1024, int(need * 1.25) + (2 << 20))))

    cost = pl.CostEstimate(
        flops=4 * M_pad * E_pad * H_pad,          # two matmuls
        transcendentals=M_pad * H_pad,            # erf in the GELU
        bytes_accessed=(
            M_pad * E_pad * (c_itemsize + out_itemsize)
            + 2 * E_pad * H_pad * c_itemsize
            + (H_pad + E_pad) * 4
        ),
    )

    resident = pl.Buffered(1)  # constant index_map -> single-buffer residents

    out = pl.pallas_call(
        mlp_block_kernel,
        out_shape=jax.ShapeDtypeStruct((M_pad, E_pad), x.dtype),
        grid_spec=pltpu.PrefetchScalarGridSpec(
            num_scalar_prefetch=0,
            grid=(num_tiles,),
            in_specs=[
                # x tile: pipelined, default Buffered(2).
                pl.BlockSpec((TM, E_pad), lambda i: (i, 0)),
                # Weights / biases: VMEM-resident, single-buffered.
                pl.BlockSpec((E_pad, H_pad), lambda i: (0, 0), pipeline_mode=resident),
                pl.BlockSpec((1, H_pad), lambda i: (0, 0), pipeline_mode=resident),
                pl.BlockSpec((H_pad, E_pad), lambda i: (0, 0), pipeline_mode=resident),
                pl.BlockSpec((1, E_pad), lambda i: (0, 0), pipeline_mode=resident),
            ],
            out_specs=pl.BlockSpec((TM, E_pad), lambda i: (i, 0)),
        ),
        compiler_params=pltpu.CompilerParams(
            dimension_semantics=("parallel",),     # megacore sharding on v7x
            vmem_limit_bytes=vmem_limit,
        ),
        cost_estimate=cost,
    )(x2d, w1c, b1_2d, w2c, b2_2d)

    out = out[:M, :E]
    return out.reshape(B, S, E)


def reference_mlp_block(x, w1, b1, w2, b2):
    h = jnp.dot(x, w1) + b1
    h = _gelu_exact_f32(h)
    return jnp.dot(h, w2) + b2


if __name__ == "__main__":
    # Small shapes consistent with the module (tokens of dim embedding_dim).
    B, S = 2, 8
    embedding_dim, mlp_dim = 32, 64

    key = jax.random.PRNGKey(0)
    kx, kw1, kb1, kw2, kb2 = jax.random.split(key, 5)

    x = jax.random.normal(kx, (B, S, embedding_dim), dtype=jnp.float32)
    # Deterministic synthetic parameter init (shapes match nn.Linear).
    w1 = jax.random.normal(kw1, (embedding_dim, mlp_dim), dtype=jnp.float32) * 0.05
    b1 = jax.random.normal(kb1, (mlp_dim,), dtype=jnp.float32) * 0.01
    w2 = jax.random.normal(kw2, (mlp_dim, embedding_dim), dtype=jnp.float32) * 0.05
    b2 = jax.random.normal(kb2, (embedding_dim,), dtype=jnp.float32) * 0.01

    y_ref = reference_mlp_block(x, w1, b1, w2, b2)

    # 1) Production path: bf16 MXU matmuls (f32 accumulation / bias / GELU).
    y_bf16 = mlp_block(x, w1, b1, w2, b2)
    y_bf16 = jax.block_until_ready(y_bf16)
    assert y_bf16.shape == (B, S, embedding_dim)
    assert jnp.allclose(y_bf16, y_ref, atol=2e-2, rtol=2e-2)

    # 2) f32 path with a tiny block_m so the multi-step tiled grid (grid=(2,))
    #    is exercised; bit-accurate vs. the f32 reference.
    y_f32 = mlp_block(x, w1, b1, w2, b2, block_m=8, compute_dtype=jnp.float32)
    y_f32 = jax.block_until_ready(y_f32)
    assert y_f32.shape == (B, S, embedding_dim)
    assert jnp.allclose(y_f32, y_ref, atol=1e-5, rtol=1e-5)

    print("KERNEL_OK")
</pallas_src>

<mosaic_0001>
module attributes {stable_mosaic.version = 11 : i64} {
  func.func @mlp_block_kernel(%arg0: i32, %arg1: memref<16x128xbf16, #tpu.memory_space<vmem>>, %arg2: memref<128x128xbf16, #tpu.memory_space<vmem>>, %arg3: memref<1x128xf32, #tpu.memory_space<vmem>>, %arg4: memref<128x128xbf16, #tpu.memory_space<vmem>>, %arg5: memref<1x128xf32, #tpu.memory_space<vmem>>, %arg6: memref<16x128xf32, #tpu.memory_space<vmem>>) attributes {dimension_semantics = [#tpu.dimension_semantics<parallel>], iteration_bounds = array<i64: 1>, scalar_prefetch = 0 : i64, scratch_operands = 0 : i64, tpu.core_type = #tpu.core_type<tc>, window_params = [{transform_indices = @transform_0, window_bounds = array<i64: 16, 128>}, {pipeline_mode = #tpu.pipeline_mode<synchronous>, transform_indices = @transform_1, window_bounds = array<i64: 128, 128>}, {pipeline_mode = #tpu.pipeline_mode<synchronous>, transform_indices = @transform_2, window_bounds = array<i64: 1, 128>}, {pipeline_mode = #tpu.pipeline_mode<synchronous>, transform_indices = @transform_3, window_bounds = array<i64: 128, 128>}, {pipeline_mode = #tpu.pipeline_mode<synchronous>, transform_indices = @transform_4, window_bounds = array<i64: 1, 128>}, {transform_indices = @transform_5, window_bounds = array<i64: 16, 128>}]} {
    %c0 = arith.constant 0 : index
    %c0_0 = arith.constant 0 : index
    %0 = vector.load %arg1[%c0, %c0_0] : memref<16x128xbf16, #tpu.memory_space<vmem>>, vector<16x128xbf16>
    %c0_1 = arith.constant 0 : index
    %c0_2 = arith.constant 0 : index
    %1 = vector.load %arg2[%c0_1, %c0_2] : memref<128x128xbf16, #tpu.memory_space<vmem>>, vector<128x128xbf16>
    %cst = arith.constant dense<0.000000e+00> : vector<16x128xf32>
    %2 = tpu.matmul %0, %1, %cst {dimension_numbers = #tpu.dot_dimension_numbers<[1], [0], [0], [1], [0, 0, 1, 1], [], []>} : vector<16x128xbf16>, vector<128x128xbf16>, vector<16x128xf32> -> vector<16x128xf32>
    %c0_3 = arith.constant 0 : index
    %c0_4 = arith.constant 0 : index
    %3 = vector.load %arg3[%c0_3, %c0_4] : memref<1x128xf32, #tpu.memory_space<vmem>>, vector<1x128xf32>
    %4 = vector.broadcast %3 : vector<1x128xf32> to vector<16x128xf32>
    %5 = arith.addf %2, %4 : vector<16x128xf32>
    %cst_5 = arith.constant 5.000000e-01 : f32
    %6 = vector.broadcast %cst_5 : f32 to vector<16x128xf32>
    %7 = arith.mulf %6, %5 : vector<16x128xf32>
    %cst_6 = arith.constant 0.707106769 : f32
    %8 = vector.broadcast %cst_6 : f32 to vector<16x128xf32>
    %9 = arith.mulf %5, %8 : vector<16x128xf32>
    %10 = math.erf %9 : vector<16x128xf32>
    %cst_7 = arith.constant 1.000000e+00 : f32
    %11 = vector.broadcast %cst_7 : f32 to vector<16x128xf32>
    %12 = arith.addf %11, %10 : vector<16x128xf32>
    %13 = arith.mulf %7, %12 : vector<16x128xf32>
    %14 = arith.truncf %13 : vector<16x128xf32> to vector<16x128xbf16>
    %c0_8 = arith.constant 0 : index
    %c0_9 = arith.constant 0 : index
    %15 = vector.load %arg4[%c0_8, %c0_9] : memref<128x128xbf16, #tpu.memory_space<vmem>>, vector<128x128xbf16>
    %cst_10 = arith.constant dense<0.000000e+00> : vector<16x128xf32>
    %16 = tpu.matmul %14, %15, %cst_10 {dimension_numbers = #tpu.dot_dimension_numbers<[1], [0], [0], [1], [0, 0, 1, 1], [], []>} : vector<16x128xbf16>, vector<128x128xbf16>, vector<16x128xf32> -> vector<16x128xf32>
    %c0_11 = arith.constant 0 : index
    %c0_12 = arith.constant 0 : index
    %17 = vector.load %arg5[%c0_11, %c0_12] : memref<1x128xf32, #tpu.memory_space<vmem>>, vector<1x128xf32>
    %18 = vector.broadcast %17 : vector<1x128xf32> to vector<16x128xf32>
    %19 = arith.addf %16, %18 : vector<16x128xf32>
    %c0_13 = arith.constant 0 : index
    %c0_14 = arith.constant 0 : index
    %20 = vector.load %arg6[%c0_13, %c0_14] : memref<16x128xf32, #tpu.memory_space<vmem>>, vector<16x128xf32>
    tpu.vector_store %arg6[%c0_13, %c0_14], %19 {strides = array<i32>} : memref<16x128xf32, #tpu.memory_space<vmem>>, vector<16x128xf32>,
    return
  }
  func.func @transform_0(%arg0: i32) -> (i32, i32) {
    %c0_i32 = arith.constant 0 : i32
    %c0_i32_0 = arith.constant 0 : i32
    return %arg0, %c0_i32 : i32, i32
  }
  func.func @transform_1(%arg0: i32) -> (i32, i32) {
    %c0_i32 = arith.constant 0 : i32
    %c0_i32_0 = arith.constant 0 : i32
    %c0_i32_1 = arith.constant 0 : i32
    return %c0_i32, %c0_i32_0 : i32, i32
  }
  func.func @transform_2(%arg0: i32) -> (i32, i32) {
    %c0_i32 = arith.constant 0 : i32
    %c0_i32_0 = arith.constant 0 : i32
    %c0_i32_1 = arith.constant 0 : i32
    return %c0_i32, %c0_i32_0 : i32, i32
  }
  func.func @transform_3(%arg0: i32) -> (i32, i32) {
    %c0_i32 = arith.constant 0 : i32
    %c0_i32_0 = arith.constant 0 : i32
    %c0_i32_1 = arith.constant 0 : i32
    return %c0_i32, %c0_i32_0 : i32, i32
  }
  func.func @transform_4(%arg0: i32) -> (i32, i32) {
    %c0_i32 = arith.constant 0 : i32
    %c0_i32_0 = arith.constant 0 : i32
    %c0_i32_1 = arith.constant 0 : i32
    return %c0_i32, %c0_i32_0 : i32, i32
  }
  func.func @transform_5(%arg0: i32) -> (i32, i32) {
    %c0_i32 = arith.constant 0 : i32
    %c0_i32_0 = arith.constant 0 : i32
    return %arg0, %c0_i32 : i32, i32
  }
}

</mosaic_0001>

<llo_original>
// kernel: mlp_block.1
$region0: #{mlp_block.1}
  #allocation0 [shape = 'u32[]', space=smem, size = 0x4, offset = 0x4, fixed_abs, tag = 'smem constant byte address 0x4 - core index']
  #allocation1 [shape = 'u32[144,128]{1,0:T(1,128)}', space=vmem, size = 0x12000, scoped, tag = 'internal scratch']
  %s0 = inlined_call_operand.vmem [shape: bf16[16,128], index: 0, kind: input, shape index: {}]
  %s1 = inlined_call_operand.vmem [shape: bf16[128,128], index: 1, kind: input, shape index: {}]
  %s2 = inlined_call_operand.vmem [shape: f32[1,128], index: 2, kind: input, shape index: {}]
  %s3 = inlined_call_operand.vmem [shape: bf16[128,128], index: 3, kind: input, shape index: {}]
  %s4 = inlined_call_operand.vmem [shape: f32[1,128], index: 4, kind: input, shape index: {}]
  %s5 = inlined_call_operand.vmem [shape: f32[16,128], index: 5, kind: output, shape index: {}]
  %s6 = sld [smem:[#allocation0]]
  $region30: #{mlp_block.1} parent=0
    _
  %s8 = ssub.s32 1, %s6
  %s9 = scalar_select 0, %s8, %s6
  // Predicated region
  $region2: #{mlp_block.1} parent=0 // pred_check
    _
  $region3: #{mlp_block.1} parent=0 // pred_check_branch
    %11 = sbr.rel (0) target = $region5
  $region4: #{mlp_block.1} parent=0 // pred_region
    _
  $region5: #{mlp_block.1} parent=0 // pred_fallthru
    _
  // Predicated region
  $region6: #{mlp_block.1} parent=0 // pred_check
    _
  $region7: #{mlp_block.1} parent=0 // pred_check_branch
    %13 = sbr.rel (0) target = $region9
  $region8: #{mlp_block.1} parent=0 // pred_region
    _
  $region9: #{mlp_block.1} parent=0 // pred_fallthru
    _
  // Predicated region
  $region10: #{mlp_block.1} parent=0 // pred_check
    _
  $region11: #{mlp_block.1} parent=0 // pred_check_branch
    %15 = sbr.rel (0) target = $region13
  $region12: #{mlp_block.1} parent=0 // pred_region
    _
  $region13: #{mlp_block.1} parent=0 // pred_fallthru
    _
  // Predicated region
  $region14: #{mlp_block.1} parent=0 // pred_check
    _
  $region15: #{mlp_block.1} parent=0 // pred_check_branch
    %17 = sbr.rel (0) target = $region17
  $region16: #{mlp_block.1} parent=0 // pred_region
    _
  $region17: #{mlp_block.1} parent=0 // pred_fallthru
    _
  // Predicated region
  $region18: #{mlp_block.1} parent=0 // pred_check
    _
  $region19: #{mlp_block.1} parent=0 // pred_check_branch
    %19 = sbr.rel (0) target = $region21
  $region20: #{mlp_block.1} parent=0 // pred_region
    _
  $region21: #{mlp_block.1} parent=0 // pred_fallthru
    _
  %v21 = vld [vmem:[%s0] sm:$0xf]
  %v22 = vld [vmem:[%s0 + $0x4] sm:$0xf]
  %v23 = vld [vmem:[%s1] sm:$0xf]
  %v24 = vld [vmem:[%s1 + $0x4] sm:$0xf]
  %v25 = vld [vmem:[%s1 + $0x8] sm:$0xf]
  %v26 = vld [vmem:[%s1 + $0xc] sm:$0xf]
  %v27 = vld [vmem:[%s1 + $0x10] sm:$0xf]
  %v28 = vld [vmem:[%s1 + $0x14] sm:$0xf]
  %v29 = vld [vmem:[%s1 + $0x18] sm:$0xf]
  %v30 = vld [vmem:[%s1 + $0x1c] sm:$0xf]
  %v31 = vld [vmem:[%s1 + $0x20] sm:$0xf]
  %v32 = vld [vmem:[%s1 + $0x24] sm:$0xf]
  %v33 = vld [vmem:[%s1 + $0x28] sm:$0xf]
  %v34 = vld [vmem:[%s1 + $0x2c] sm:$0xf]
  %v35 = vld [vmem:[%s1 + $0x30] sm:$0xf]
  %v36 = vld [vmem:[%s1 + $0x34] sm:$0xf]
  %v37 = vld [vmem:[%s1 + $0x38] sm:$0xf]
  %v38 = vld [vmem:[%s1 + $0x3c] sm:$0xf]
  %v39 = vld [vmem:[%s2] sm:$0x1]
  %v41 = vlaneseq
  %v42 = vshrl.u32 %v41, 7
  %v43 = vsub.s32 0, %v42
  %v44 = vrot.slane %v39, %v43
  %v48 = vunpack.c.l.b16 %v21
  %v49 = vunpack.c.l.b16 %v22
  %v50 = vpack.c.b16 %v49, %v48
  %v68 = vunpack.c.l.b16 %v23
  %v69 = vunpack.c.l.b16 %v24
  %v70 = vunpack.c.l.b16 %v25
  %v71 = vunpack.c.l.b16 %v26
  %v72 = vunpack.c.l.b16 %v27
  %v73 = vunpack.c.l.b16 %v28
  %v74 = vunpack.c.l.b16 %v29
  %v75 = vunpack.c.l.b16 %v30
  %v76 = vunpack.c.l.b16 %v31
  %v77 = vunpack.c.l.b16 %v32
  %v78 = vunpack.c.l.b16 %v33
  %v79 = vunpack.c.l.b16 %v34
  %v80 = vunpack.c.l.b16 %v35
  %v81 = vunpack.c.l.b16 %v36
  %v82 = vunpack.c.l.b16 %v37
  %v83 = vunpack.c.l.b16 %v38
  %v84 = vpack.c.b16 %v69, %v68
  %v85 = vpack.c.b16 %v71, %v70
  %v86 = vpack.c.b16 %v73, %v72
  %v87 = vpack.c.b16 %v75, %v74
  %v88 = vpack.c.b16 %v77, %v76
  %v89 = vpack.c.b16 %v79, %v78
  %v90 = vpack.c.b16 %v81, %v80
  %v91 = vpack.c.b16 %v83, %v82
  %100 = vmatprep.subr.bf16.mxu0 0
  %101 = vmatpush1.bf16.msra.mxu0 %v84
  %102 = vmatprep.subr.bf16.mxu0 0
  %103 = vmatpush1.bf16.msra.mxu0 %v85
  %104 = vmatprep.subr.bf16.mxu0 0
  %105 = vmatpush1.bf16.msra.mxu0 %v86
  %106 = vmatprep.subr.bf16.mxu0 0
  %107 = vmatpush1.bf16.msra.mxu0 %v87
  %108 = vmatprep.subr.bf16.mxu0 0
  %109 = vmatpush1.bf16.msra.mxu0 %v88
  %110 = vmatprep.subr.bf16.mxu0 0
  %111 = vmatpush1.bf16.msra.mxu0 %v89
  %112 = vmatprep.subr.bf16.mxu0 0
  %113 = vmatpush1.bf16.msra.mxu0 %v90
  %114 = vmatprep.subr.bf16.mxu0 0
  %115 = vmatpush1.bf16.msra.mxu0 %v91
  %116 = vmatprep.subr.bf16.mxu0 0
  %117 = vmatpush1.bf16.msra.mxu0 0
  %118 = vmatprep.subr.bf16.mxu0 0
  %119 = vmatpush1.bf16.msra.mxu0 0
  %120 = vmatprep.subr.bf16.mxu0 0
  %121 = vmatpush1.bf16.msra.mxu0 0
  %122 = vmatprep.subr.bf16.mxu0 0
  %123 = vmatpush1.bf16.msra.mxu0 0
  %124 = vmatprep.subr.bf16.mxu0 0
  %125 = vmatpush1.bf16.msra.mxu0 0
  %126 = vmatprep.subr.bf16.mxu0 0
  %127 = vmatpush1.bf16.msra.mxu0 0
  %128 = vmatprep.subr.bf16.mxu0 0
  %129 = vmatpush1.bf16.msra.mxu0 0
  %130 = vmatprep.subr.bf16.mxu0 0
  %131 = vmatpush1.bf16.msra.mxu0 0
  %132 = vmatprep.mubr.bf16.mxu0 0
  %133 = vmatmul.mubr.bf16.gmra.mrb[0].mxu0 %v50
  %v134 = vpop.f32.mrb[0].mxu0
  %v135 = vadd.f32 %v44, %v134
  %v136 = vpop.f32.mrb[0].mxu0
  %v137 = vpop.f32.mrb[0].mxu0
  %v138 = vadd.f32 %v44, %v137
  %v139 = vpop.f32.mrb[0].mxu0
  %140 = vdwg.mxu0
  %v141 = vmul.f32 %v135, 0.5
  %v142 = vmul.f32 %v138, 0.5
  %v143 = vmul.f32 %v135, 0.70710677
  %v144 = vmul.f32 %v138, 0.70710677
  %v145 = verf.f32.pop %v143
  %v146 = verf.f32.pop %v144
  %v147 = vadd.f32 %v145, 1.0
  %v148 = vadd.f32 %v146, 1.0
  %v149 = vmul.f32 %v141, %v147
  %v150 = vmul.f32 %v142, %v148
  %v151 = vpack.c.bf16 %v150, %v149
  %v152 = vld [vmem:[%s3] sm:$0xf]
  %v153 = vld [vmem:[%s3 + $0x4] sm:$0xf]
  %v154 = vld [vmem:[%s3 + $0x8] sm:$0xf]
  %v155 = vld [vmem:[%s3 + $0xc] sm:$0xf]
  %v156 = vld [vmem:[%s3 + $0x10] sm:$0xf]
  %v157 = vld [vmem:[%s3 + $0x14] sm:$0xf]
  %v158 = vld [vmem:[%s3 + $0x18] sm:$0xf]
  %v159 = vld [vmem:[%s3 + $0x1c] sm:$0xf]
  %v160 = vld [vmem:[%s3 + $0x20] sm:$0xf]
  %v161 = vld [vmem:[%s3 + $0x24] sm:$0xf]
  %v162 = vld [vmem:[%s3 + $0x28] sm:$0xf]
  %v163 = vld [vmem:[%s3 + $0x2c] sm:$0xf]
  %v164 = vld [vmem:[%s3 + $0x30] sm:$0xf]
  %v165 = vld [vmem:[%s3 + $0x34] sm:$0xf]
  %v166 = vld [vmem:[%s3 + $0x38] sm:$0xf]
  %v167 = vld [vmem:[%s3 + $0x3c] sm:$0xf]
  %v168 = vld [vmem:[%s4] sm:$0x1]
  %v170 = vlaneseq
  %v171 = vshrl.u32 %v170, 7
  %v172 = vsub.s32 0, %v171
  %v173 = vrot.slane %v168, %v172
  %v191 = vunpack.c.l.b16 %v152
  %v192 = vunpack.c.l.b16 %v153
  %v193 = vunpack.c.l.b16 %v154
  %v194 = vunpack.c.l.b16 %v155
  %v195 = vunpack.c.l.b16 %v156
  %v196 = vunpack.c.l.b16 %v157
  %v197 = vunpack.c.l.b16 %v158
  %v198 = vunpack.c.l.b16 %v159
  %v199 = vunpack.c.l.b16 %v160
  %v200 = vunpack.c.l.b16 %v161
  %v201 = vunpack.c.l.b16 %v162
  %v202 = vunpack.c.l.b16 %v163
  %v203 = vunpack.c.l.b16 %v164
  %v204 = vunpack.c.l.b16 %v165
  %v205 = vunpack.c.l.b16 %v166
  %v206 = vunpack.c.l.b16 %v167
  %v207 = vpack.c.b16 %v192, %v191
  %v208 = vpack.c.b16 %v194, %v193
  %v209 = vpack.c.b16 %v196, %v195
  %v210 = vpack.c.b16 %v198, %v197
  %v211 = vpack.c.b16 %v200, %v199
  %v212 = vpack.c.b16 %v202, %v201
  %v213 = vpack.c.b16 %v204, %v203
  %v214 = vpack.c.b16 %v206, %v205
  %223 = vmatprep.subr.bf16.mxu0 0
  %224 = vmatpush1.bf16.msra.mxu0 %v207
  %225 = vmatprep.subr.bf16.mxu0 0
  %226 = vmatpush1.bf16.msra.mxu0 %v208
  %227 = vmatprep.subr.bf16.mxu0 0
  %228 = vmatpush1.bf16.msra.mxu0 %v209
  %229 = vmatprep.subr.bf16.mxu0 0
  %230 = vmatpush1.bf16.msra.mxu0 %v210
  %231 = vmatprep.subr.bf16.mxu0 0
  %232 = vmatpush1.bf16.msra.mxu0 %v211
  %233 = vmatprep.subr.bf16.mxu0 0
  %234 = vmatpush1.bf16.msra.mxu0 %v212
  %235 = vmatprep.subr.bf16.mxu0 0
  %236 = vmatpush1.bf16.msra.mxu0 %v213
  %237 = vmatprep.subr.bf16.mxu0 0
  %238 = vmatpush1.bf16.msra.mxu0 %v214
  %239 = vmatprep.subr.bf16.mxu0 0
  %240 = vmatpush1.bf16.msra.mxu0 0
  %241 = vmatprep.subr.bf16.mxu0 0
  %242 = vmatpush1.bf16.msra.mxu0 0
  %243 = vmatprep.subr.bf16.mxu0 0
  %244 = vmatpush1.bf16.msra.mxu0 0
  %245 = vmatprep.subr.bf16.mxu0 0
  %246 = vmatpush1.bf16.msra.mxu0 0
  %247 = vmatprep.subr.bf16.mxu0 0
  %248 = vmatpush1.bf16.msra.mxu0 0
  %249 = vmatprep.subr.bf16.mxu0 0
  %250 = vmatpush1.bf16.msra.mxu0 0
  %251 = vmatprep.subr.bf16.mxu0 0
  %252 = vmatpush1.bf16.msra.mxu0 0
  %253 = vmatprep.subr.bf16.mxu0 0
  %254 = vmatpush1.bf16.msra.mxu0 0
  %255 = vmatprep.mubr.bf16.mxu0 0
  %256 = vmatmul.mubr.bf16.gmra.mrb[0].mxu0 %v151
  %v257 = vpop.f32.mrb[0].mxu0
  %v258 = vadd.f32 %v173, %v257
  %v259 = vpop.f32.mrb[0].mxu0
  %v260 = vpop.f32.mrb[0].mxu0
  %v261 = vadd.f32 %v173, %v260
  %v262 = vpop.f32.mrb[0].mxu0
  %263 = vdwg.mxu0
  %264 = vst [vmem:[%s5] sm:$0xff] %v258
  %265 = vst [vmem:[%s5 + $0x8] sm:$0xff] %v261
  // Predicated region
  $region22: #{mlp_block.1} parent=0 // pred_check
    _
  $region23: #{mlp_block.1} parent=0 // pred_check_branch
    %267 = sbr.rel (0) target = $region25
  $region24: #{mlp_block.1} parent=0 // pred_region
    _
  $region25: #{mlp_block.1} parent=0 // pred_fallthru
    _
  // Predicated region
  $region26: #{mlp_block.1} parent=0 // pred_check
    _
  $region27: #{mlp_block.1} parent=0 // pred_check_branch
    %269 = sbr.rel (0) target = $region29
  $region28: #{mlp_block.1} parent=0 // pred_region
    _
  $region29: #{mlp_block.1} parent=0 // pred_fallthru
    _

</llo_original>
